<compile_context>
chip_gen: v7x
topology: tpu7x:2x2x1
jax: 0.10.0
libtpu: 0.0.40
codegen_flags: <defaults>
</compile_context>

<pallas_src>
import functools

import jax
import jax.numpy as jnp
from jax import lax
from jax.experimental import pallas as pl
from jax.experimental.pallas import tpu as pltpu

_MXU_DTYPE = jnp.bfloat16


def _round_up(v, m):
    return (v + m - 1) // m * m


def _vmem_budget():
    """Generation-aware (vmem_limit_bytes, small_vmem) pair."""
    cap = None
    try:
        cap = getattr(pltpu.get_tpu_info(), "vmem_capacity_bytes", None)
    except Exception:
        cap = None
    if cap is None:
        cap = 64 * 1024 * 1024            # conservative: assume v7x-like
    if cap >= 100 * 1024 * 1024:          # v5e / v6e: 128 MiB physical VMEM
        return 64 * 1024 * 1024, False
    return 30 * 1024 * 1024, True         # v7x: 64 MiB physical, 2 TensorCores


def prepare_lut(lut):
    """Pad/cast the OIM lookup table once (keep as persistent bf16 state).

    Passing the result to oim_loss (with the true num_classes) removes the
    per-call f32-read + bf16-write pass over the largest operand.
    """
    C, F = lut.shape
    Cp, Fp = _round_up(C, 128), _round_up(F, 128)
    if lut.dtype == _MXU_DTYPE and (C, F) == (Cp, Fp):
        return lut
    return jnp.zeros((Cp, Fp), _MXU_DTYPE).at[:C, :F].set(lut.astype(_MXU_DTYPE))


def _oim_loss_kernel(scalar_ref, tgt_ref, x_ref, lut_ref,
                     logits_ref, ploss_ref,
                     m_scr, l_scr, t_scr, *,
                     num_classes, batch_size, mask_classes):
    """One (batch tile, class tile) step of fused OIM logits + cross-entropy.

    scalar_ref: (1,)     f32  SMEM  temperature
    tgt_ref:    (tb, 1)  i32  VMEM  (padded rows carry -1)
    x_ref:      (tb, F)  bf16 VMEM
    lut_ref:    (tc, F)  bf16 VMEM
    logits_ref: (tb, tc)      VMEM  scaled logits block (bf16 or f32)
    ploss_ref:  (tb, 1)  f32  VMEM  per-example loss (padded rows -> 0)
    m/l/t_scr:  (tb, 1)  f32  VMEM  online-LSE state
    """
    bi = pl.program_id(0)
    ci = pl.program_id(1)
    nc = pl.num_programs(1)
    tb, tc = logits_ref.shape

    @pl.when(ci == 0)
    def _init():
        m_scr[...] = jnp.full(m_scr.shape, -jnp.inf, m_scr.dtype)
        l_scr[...] = jnp.zeros(l_scr.shape, l_scr.dtype)
        t_scr[...] = jnp.zeros(t_scr.shape, t_scr.dtype)

    scale = scalar_ref[0]                                  # SMEM scalar splat

    # logits = x @ lut.T : contract feature dim of both operands (no
    # materialized transpose). bf16 MXU feed, f32 accumulation.
    logits = lax.dot_general(
        x_ref[...], lut_ref[...],
        dimension_numbers=(((1,), (1,)), ((), ())),
        preferred_element_type=jnp.float32) * scale        # (tb, tc) f32

    logits_ref[...] = logits.astype(logits_ref.dtype)

    col = lax.broadcasted_iota(jnp.int32, logits.shape, 1) + ci * tc

    if mask_classes:
        # Cp = round_up(C, tc) guarantees every class tile holds >= 1 valid
        # column, so m_new below stays finite (no -inf - -inf NaN).
        masked = jnp.where(col < num_classes, logits, -jnp.inf)
    else:
        masked = logits

    # Online log-sum-exp update.
    m_prev = m_scr[...]
    m_new = jnp.maximum(m_prev, jnp.max(masked, axis=-1, keepdims=True))
    alpha = jnp.exp(m_prev - m_new)
    p = jnp.exp(masked - m_new)
    l_scr[...] = alpha * l_scr[...] + jnp.sum(p, axis=-1, keepdims=True)
    m_scr[...] = m_new

    # Target-logit gather fused in the same pass; padded rows have target -1
    # and padded columns exceed all real targets, so no extra validity mask.
    onehot = col == tgt_ref[...]
    t_scr[...] = t_scr[...] + jnp.sum(jnp.where(onehot, logits, 0.0),
                                      axis=-1, keepdims=True)

    @pl.when(ci == nc - 1)
    def _finalize():
        lse = m_scr[...] + jnp.log(l_scr[...])
        per_ex = lse - t_scr[...]
        row = lax.broadcasted_iota(jnp.int32, per_ex.shape, 0) + bi * tb
        # Zero padded batch rows so the wrapper can sum without slicing.
        ploss_ref[...] = jnp.where(row < batch_size, per_ex, 0.0)


def oim_loss(inputs, targets, lut, scalar=1.0, *, num_classes=None,
             logits_dtype=jnp.bfloat16, max_lut_resident_bytes=None,
             batch_tile=None, class_tile=None):
    """Pallas implementation of OIMLoss.forward -> (loss, scaled_logits).

    `lut` may be raw f32 (padded/cast per call) or the result of prepare_lut
    (zero extra HBM passes); pass num_classes when using a prepared LUT.
    batch_tile / class_tile / max_lut_resident_bytes are tuning/test knobs.
    """
    B, F = inputs.shape
    C = int(num_classes) if num_classes is not None else lut.shape[0]

    vmem_limit, small_vmem = _vmem_budget()
    tile_budget = vmem_limit - 4 * 1024 * 1024
    logit_bytes = jnp.dtype(logits_dtype).itemsize

    Fp = _round_up(max(F, lut.shape[1]), 128)

    # --- batch tile --------------------------------------------------------
    Bp16 = _round_up(B, 16)
    if batch_tile is not None:
        tb = int(batch_tile)
        assert tb % 16 == 0
        Bp = _round_up(B, tb)
    else:
        tb = min(256, Bp16)
        Bp = _round_up(B, tb)
        # Avoid gross batch padding (wasted MXU rows) for awkward batch sizes.
        while tb > 16 and (Bp - B) * 4 > B and tb % 32 == 0:
            tb //= 2
            Bp = _round_up(B, tb)
        # v7x-like parts: guarantee >= 2 batch tiles so the "parallel" axis
        # actually shards across both TensorCores.
        if small_vmem and Bp // tb == 1 and tb % 32 == 0:
            tb //= 2
            Bp = _round_up(B, tb)

    # --- class tile: keep the LUT VMEM-resident whenever it fits -----------
    Cp128 = _round_up(C, 128)
    misc = 2 * tb * 4 + 2 * tb * 4 + 3 * tb * 4            # targets/ploss/scratch
    resident_cost = (2 * Cp128 * Fp * 2                    # lut bufs (bf16)
                     + 2 * tb * Cp128 * logit_bytes        # logits blocks
                     + 2 * tb * Fp * 2 + misc)             # x blocks + misc
    resident_budget = (tile_budget if max_lut_resident_bytes is None
                       else int(max_lut_resident_bytes))

    if class_tile is None and resident_cost <= resident_budget:
        tc, Cp = Cp128, Cp128
        lut_buffered = None            # constant block index -> fetched once
    else:
        candidates = ((int(class_tile),) if class_tile is not None
                      else (1024, 512, 256, 128))
        tc = candidates[-1]
        for cand in candidates:
            cost = (3 * cand * Fp * 2 + 2 * tb * cand * logit_bytes
                    + 2 * tb * Fp * 2 + misc)
            if cost <= tile_budget:
                tc = cand
                break
        Cp = _round_up(C, tc)
        lut_buffered = pl.Buffered(3)  # deeper pipeline while LUT streams

    # --- pad / cast operands (skipped when already aligned) ----------------
    if inputs.dtype == _MXU_DTYPE and inputs.shape == (Bp, Fp):
        x_p = inputs
    else:
        x_p = jnp.zeros((Bp, Fp), _MXU_DTYPE).at[:B, :F].set(
            inputs.astype(_MXU_DTYPE))

    if lut.dtype == _MXU_DTYPE and lut.shape == (Cp, Fp):
        lut_p = lut                    # pre-prepared: no extra HBM pass
    else:
        r = min(lut.shape[0], Cp)
        c = min(lut.shape[1], Fp)
        lut_p = jnp.zeros((Cp, Fp), _MXU_DTYPE).at[:r, :c].set(
            lut[:r, :c].astype(_MXU_DTYPE))

    tgt_p = jnp.full((Bp, 1), -1, jnp.int32).at[:B, 0].set(
        targets.astype(jnp.int32))
    scalar_arr = jnp.asarray([scalar], jnp.float32)

    grid = (Bp // tb, Cp // tc)

    if lut_buffered is None:
        lut_spec = pl.BlockSpec((tc, Fp), lambda bi, ci: (ci, 0))
    else:
        lut_spec = pl.BlockSpec((tc, Fp), lambda bi, ci: (ci, 0),
                                pipeline_mode=lut_buffered)

    kernel = functools.partial(_oim_loss_kernel, num_classes=C,
                               batch_size=B, mask_classes=(Cp != C))

    logits_p, ploss = pl.pallas_call(
        kernel,
        grid_spec=pltpu.PrefetchScalarGridSpec(
            num_scalar_prefetch=0,
            grid=grid,
            in_specs=[
                pl.BlockSpec(memory_space=pltpu.MemorySpace.SMEM),   # scalar
                pl.BlockSpec((tb, 1), lambda bi, ci: (bi, 0)),       # targets
                pl.BlockSpec((tb, Fp), lambda bi, ci: (bi, 0)),      # inputs
                lut_spec,                                            # lut
            ],
            out_specs=[
                pl.BlockSpec((tb, tc), lambda bi, ci: (bi, ci)),     # logits
                pl.BlockSpec((tb, 1), lambda bi, ci: (bi, 0)),       # per-ex loss
            ],
            scratch_shapes=[
                pltpu.VMEM((tb, 1), jnp.float32),   # running max
                pltpu.VMEM((tb, 1), jnp.float32),   # running denom
                pltpu.VMEM((tb, 1), jnp.float32),   # target logit
            ],
        ),
        out_shape=(
            jax.ShapeDtypeStruct((Bp, Cp), logits_dtype),
            jax.ShapeDtypeStruct((Bp, 1), jnp.float32),
        ),
        compiler_params=pltpu.CompilerParams(
            dimension_semantics=("parallel", "arbitrary"),
            vmem_limit_bytes=int(vmem_limit),
        ),
    )(scalar_arr, tgt_p, x_p, lut_p)

    logits = logits_p[:B, :C]
    loss = jnp.sum(ploss[:, 0]) / jnp.float32(B)   # padded rows already zeroed
    return loss, logits


def _reference(inputs, targets, lut, scalar=1.0, matmul_dtype=jnp.float32):
    """Pure-JAX reference of OIMLoss.forward for verification."""
    logits = jnp.dot(inputs.astype(matmul_dtype),
                     lut.astype(matmul_dtype).T,
                     preferred_element_type=jnp.float32) * scalar
    lse = jax.nn.logsumexp(logits, axis=-1)
    tgt = jnp.take_along_axis(logits, targets[:, None].astype(jnp.int32),
                              axis=-1)[:, 0]
    return jnp.mean(lse - tgt), logits


if __name__ == "__main__":
    key = jax.random.PRNGKey(0)
    k_x, k_lut, k_t, k_x2, k_lut2, k_t2 = jax.random.split(key, 6)

    # ---- test 1: resident-LUT path with a pre-prepared bf16 LUT -----------
    batch, num_features, num_classes = 8, 32, 16
    scalar = 10.0
    inputs = jax.random.normal(k_x, (batch, num_features), dtype=jnp.float32)
    lut = jax.random.normal(k_lut, (num_classes, num_features),
                            dtype=jnp.float32) * 0.1
    targets = jax.random.randint(k_t, (batch,), 0, num_classes,
                                 dtype=jnp.int32)

    lut_prepared = prepare_lut(lut)          # persistent padded bf16 state
    loss, logits = oim_loss(inputs, targets, lut_prepared, scalar=scalar,
                            num_classes=num_classes)
    jax.block_until_ready((loss, logits))

    ref_loss, ref_logits = _reference(inputs, targets, lut, scalar=scalar,
                                      matmul_dtype=jnp.bfloat16)
    assert logits.shape == (batch, num_classes)
    assert jnp.allclose(logits.astype(jnp.float32),
                        ref_logits.astype(jnp.bfloat16).astype(jnp.float32),
                        atol=1e-1, rtol=5e-2)
    assert jnp.allclose(loss, ref_loss, atol=2e-3, rtol=2e-3)

    # Loose sanity check against full-f32 module semantics.
    ref_loss32, ref_logits32 = _reference(inputs, targets, lut, scalar=scalar)
    assert jnp.allclose(logits.astype(jnp.float32), ref_logits32,
                        atol=3e-1, rtol=1e-1)
    assert jnp.allclose(loss, ref_loss32, atol=3e-1, rtol=1e-1)

    # ---- test 2: streamed-LUT path (multi class & batch tiles, online LSE,
    #              Buffered(3) LUT pipeline), forced via a zero residency
    #              budget so the small test shapes exercise that code path. --
    b2, f2, c2 = 40, 40, 300
    inputs2 = jax.random.normal(k_x2, (b2, f2), dtype=jnp.float32)
    lut2 = jax.random.normal(k_lut2, (c2, f2), dtype=jnp.float32) * 0.1
    targets2 = jax.random.randint(k_t2, (b2,), 0, c2, dtype=jnp.int32)

    loss2, logits2 = oim_loss(inputs2, targets2, lut2, scalar=5.0,
                              max_lut_resident_bytes=0,
                              batch_tile=16, class_tile=128)
    jax.block_until_ready((loss2, logits2))

    ref_loss2, ref_logits2 = _reference(inputs2, targets2, lut2, scalar=5.0,
                                        matmul_dtype=jnp.bfloat16)
    assert logits2.shape == (b2, c2)
    assert jnp.allclose(logits2.astype(jnp.float32),
                        ref_logits2.astype(jnp.bfloat16).astype(jnp.float32),
                        atol=1e-1, rtol=5e-2)
    assert jnp.allclose(loss2, ref_loss2, atol=2e-3, rtol=2e-3)

    print("KERNEL_OK")
</pallas_src>

<mosaic_0001>
module attributes {stable_mosaic.version = 11 : i64} {
  func.func @_oim_loss_kernel(%arg0: i32, %arg1: i32, %arg2: memref<1xf32, #tpu.memory_space<smem>>, %arg3: memref<16x1xi32, #tpu.memory_space<vmem>>, %arg4: memref<16x128xbf16, #tpu.memory_space<vmem>>, %arg5: memref<128x128xbf16, #tpu.memory_space<vmem>>, %arg6: memref<16x128xbf16, #tpu.memory_space<vmem>>, %arg7: memref<16x1xf32, #tpu.memory_space<vmem>>, %arg8: memref<16x1xf32, #tpu.memory_space<vmem>>, %arg9: memref<16x1xf32, #tpu.memory_space<vmem>>, %arg10: memref<16x1xf32, #tpu.memory_space<vmem>>) attributes {dimension_semantics = [#tpu.dimension_semantics<parallel>, #tpu.dimension_semantics<arbitrary>], iteration_bounds = array<i64: 1, 1>, scalar_prefetch = 0 : i64, scratch_operands = 3 : i64, tpu.core_type = #tpu.core_type<tc>, window_params = [{transform_indices = @transform_0, window_bounds = array<i64: 1>}, {transform_indices = @transform_1, window_bounds = array<i64: 16, 1>}, {transform_indices = @transform_2, window_bounds = array<i64: 16, 128>}, {transform_indices = @transform_3, window_bounds = array<i64: 128, 128>}, {transform_indices = @transform_4, window_bounds = array<i64: 16, 128>}, {transform_indices = @transform_5, window_bounds = array<i64: 16, 1>}]} {
    %c0_i32 = arith.constant 0 : i32
    %0 = arith.cmpi eq, %arg1, %c0_i32 : i32
    %1 = arith.extui %0 : i1 to i32
    %c0_i32_0 = arith.constant 0 : i32
    %2 = arith.cmpi ne, %1, %c0_i32_0 : i32
    scf.if %2 {
      %cst_28 = arith.constant 0xFF800000 : f32
      %48 = vector.broadcast %cst_28 : f32 to vector<16x1xf32>
      %c0_29 = arith.constant 0 : index
      %c0_30 = arith.constant 0 : index
      %49 = vector.load %arg8[%c0_29, %c0_30] : memref<16x1xf32, #tpu.memory_space<vmem>>, vector<16x1xf32>
      tpu.vector_store %arg8[%c0_29, %c0_30], %48 {strides = array<i32>} : memref<16x1xf32, #tpu.memory_space<vmem>>, vector<16x1xf32>,
      %cst_31 = arith.constant 0.000000e+00 : f32
      %50 = vector.broadcast %cst_31 : f32 to vector<16x1xf32>
      %c0_32 = arith.constant 0 : index
      %c0_33 = arith.constant 0 : index
      %51 = vector.load %arg9[%c0_32, %c0_33] : memref<16x1xf32, #tpu.memory_space<vmem>>, vector<16x1xf32>
      tpu.vector_store %arg9[%c0_32, %c0_33], %50 {strides = array<i32>} : memref<16x1xf32, #tpu.memory_space<vmem>>, vector<16x1xf32>,
      %cst_34 = arith.constant 0.000000e+00 : f32
      %52 = vector.broadcast %cst_34 : f32 to vector<16x1xf32>
      %c0_35 = arith.constant 0 : index
      %c0_36 = arith.constant 0 : index
      %53 = vector.load %arg10[%c0_35, %c0_36] : memref<16x1xf32, #tpu.memory_space<vmem>>, vector<16x1xf32>
      tpu.vector_store %arg10[%c0_35, %c0_36], %52 {strides = array<i32>} : memref<16x1xf32, #tpu.memory_space<vmem>>, vector<16x1xf32>,
    } else {
    }
    %c0 = arith.constant 0 : index
    %3 = memref.load %arg2[%c0] : memref<1xf32, #tpu.memory_space<smem>>
    %c0_1 = arith.constant 0 : index
    %c0_2 = arith.constant 0 : index
    %4 = vector.load %arg4[%c0_1, %c0_2] : memref<16x128xbf16, #tpu.memory_space<vmem>>, vector<16x128xbf16>
    %c0_3 = arith.constant 0 : index
    %c0_4 = arith.constant 0 : index
    %5 = vector.load %arg5[%c0_3, %c0_4] : memref<128x128xbf16, #tpu.memory_space<vmem>>, vector<128x128xbf16>
    %cst = arith.constant dense<0.000000e+00> : vector<16x128xf32>
    %6 = tpu.matmul %4, %5, %cst {dimension_numbers = #tpu.dot_dimension_numbers<[1], [1], [0], [0], [0, 0, 1, 0], [], []>} : vector<16x128xbf16>, vector<128x128xbf16>, vector<16x128xf32> -> vector<16x128xf32>
    %7 = vector.broadcast %3 : f32 to vector<16x128xf32>
    %8 = arith.mulf %6, %7 : vector<16x128xf32>
    %9 = arith.truncf %8 : vector<16x128xf32> to vector<16x128xbf16>
    %c0_5 = arith.constant 0 : index
    %c0_6 = arith.constant 0 : index
    %10 = vector.load %arg6[%c0_5, %c0_6] : memref<16x128xbf16, #tpu.memory_space<vmem>>, vector<16x128xbf16>
    tpu.vector_store %arg6[%c0_5, %c0_6], %9 {strides = array<i32>} : memref<16x128xbf16, #tpu.memory_space<vmem>>, vector<16x128xbf16>,
    %11 = tpu.iota {dimensions = array<i32: 1>} : vector<16x128xi32>
    %c128_i32 = arith.constant 128 : i32
    %12 = arith.muli %arg1, %c128_i32 : i32
    %13 = vector.broadcast %12 : i32 to vector<16x128xi32>
    %14 = arith.addi %11, %13 : vector<16x128xi32>
    %c16_i32 = arith.constant 16 : i32
    %15 = vector.broadcast %c16_i32 : i32 to vector<16x128xi32>
    %16 = arith.cmpi slt, %14, %15 : vector<16x128xi32>
    %cst_7 = arith.constant 0xFF800000 : f32
    %17 = vector.broadcast %cst_7 : f32 to vector<16x128xf32>
    %18 = arith.select %16, %8, %17 : vector<16x128xi1>, vector<16x128xf32>
    %c0_8 = arith.constant 0 : index
    %c0_9 = arith.constant 0 : index
    %19 = vector.load %arg8[%c0_8, %c0_9] : memref<16x1xf32, #tpu.memory_space<vmem>>, vector<16x1xf32>
    %cst_10 = arith.constant dense<0xFF800000> : vector<16xf32>
    %20 = vector.multi_reduction <maximumf>, %18, %cst_10 [1] : vector<16x128xf32> to vector<16xf32>
    %21 = vector.shape_cast %20 : vector<16xf32> to vector<16x1xf32>
    %22 = arith.maximumf %19, %21 : vector<16x1xf32>
    %23 = arith.subf %19, %22 : vector<16x1xf32>
    %24 = math.exp %23 : vector<16x1xf32>
    %25 = vector.broadcast %22 : vector<16x1xf32> to vector<16x128xf32>
    %26 = arith.subf %18, %25 : vector<16x128xf32>
    %27 = math.exp %26 : vector<16x128xf32>
    %c0_11 = arith.constant 0 : index
    %c0_12 = arith.constant 0 : index
    %28 = vector.load %arg9[%c0_11, %c0_12] : memref<16x1xf32, #tpu.memory_space<vmem>>, vector<16x1xf32>
    %29 = arith.mulf %24, %28 : vector<16x1xf32>
    %cst_13 = arith.constant dense<0.000000e+00> : vector<16xf32>
    %30 = vector.multi_reduction <add>, %27, %cst_13 [1] : vector<16x128xf32> to vector<16xf32>
    %31 = vector.shape_cast %30 : vector<16xf32> to vector<16x1xf32>
    %32 = arith.addf %29, %31 : vector<16x1xf32>
    %c0_14 = arith.constant 0 : index
    %c0_15 = arith.constant 0 : index
    %33 = vector.load %arg9[%c0_14, %c0_15] : memref<16x1xf32, #tpu.memory_space<vmem>>, vector<16x1xf32>
    tpu.vector_store %arg9[%c0_14, %c0_15], %32 {strides = array<i32>} : memref<16x1xf32, #tpu.memory_space<vmem>>, vector<16x1xf32>,
    %c0_16 = arith.constant 0 : index
    %c0_17 = arith.constant 0 : index
    %34 = vector.load %arg8[%c0_16, %c0_17] : memref<16x1xf32, #tpu.memory_space<vmem>>, vector<16x1xf32>
    tpu.vector_store %arg8[%c0_16, %c0_17], %22 {strides = array<i32>} : memref<16x1xf32, #tpu.memory_space<vmem>>, vector<16x1xf32>,
    %c0_18 = arith.constant 0 : index
    %c0_19 = arith.constant 0 : index
    %35 = vector.load %arg3[%c0_18, %c0_19] : memref<16x1xi32, #tpu.memory_space<vmem>>, vector<16x1xi32>
    %36 = vector.broadcast %35 : vector<16x1xi32> to vector<16x128xi32>
    %37 = arith.cmpi eq, %14, %36 : vector<16x128xi32>
    %c0_20 = arith.constant 0 : index
    %c0_21 = arith.constant 0 : index
    %38 = vector.load %arg10[%c0_20, %c0_21] : memref<16x1xf32, #tpu.memory_space<vmem>>, vector<16x1xf32>
    %cst_22 = arith.constant 0.000000e+00 : f32
    %39 = vector.broadcast %cst_22 : f32 to vector<16x128xf32>
    %40 = arith.select %37, %8, %39 : vector<16x128xi1>, vector<16x128xf32>
    %cst_23 = arith.constant dense<0.000000e+00> : vector<16xf32>
    %41 = vector.multi_reduction <add>, %40, %cst_23 [1] : vector<16x128xf32> to vector<16xf32>
    %42 = vector.shape_cast %41 : vector<16xf32> to vector<16x1xf32>
    %43 = arith.addf %38, %42 : vector<16x1xf32>
    %c0_24 = arith.constant 0 : index
    %c0_25 = arith.constant 0 : index
    %44 = vector.load %arg10[%c0_24, %c0_25] : memref<16x1xf32, #tpu.memory_space<vmem>>, vector<16x1xf32>
    tpu.vector_store %arg10[%c0_24, %c0_25], %43 {strides = array<i32>} : memref<16x1xf32, #tpu.memory_space<vmem>>, vector<16x1xf32>,
    %c0_i32_26 = arith.constant 0 : i32
    %45 = arith.cmpi eq, %arg1, %c0_i32_26 : i32
    %46 = arith.extui %45 : i1 to i32
    %c0_i32_27 = arith.constant 0 : i32
    %47 = arith.cmpi ne, %46, %c0_i32_27 : i32
    scf.if %47 {
      %c0_28 = arith.constant 0 : index
      %c0_29 = arith.constant 0 : index
      %48 = vector.load %arg8[%c0_28, %c0_29] : memref<16x1xf32, #tpu.memory_space<vmem>>, vector<16x1xf32>
      %c0_30 = arith.constant 0 : index
      %c0_31 = arith.constant 0 : index
      %49 = vector.load %arg9[%c0_30, %c0_31] : memref<16x1xf32, #tpu.memory_space<vmem>>, vector<16x1xf32>
      %50 = math.log %49 : vector<16x1xf32>
      %51 = arith.addf %48, %50 : vector<16x1xf32>
      %c0_32 = arith.constant 0 : index
      %c0_33 = arith.constant 0 : index
      %52 = vector.load %arg10[%c0_32, %c0_33] : memref<16x1xf32, #tpu.memory_space<vmem>>, vector<16x1xf32>
      %53 = arith.subf %51, %52 : vector<16x1xf32>
      %54 = tpu.iota {dimensions = array<i32: 0>} : vector<16x1xi32>
      %c16_i32_34 = arith.constant 16 : i32
      %55 = arith.muli %arg0, %c16_i32_34 : i32
      %56 = vector.broadcast %55 : i32 to vector<16x1xi32>
      %57 = arith.addi %54, %56 : vector<16x1xi32>
      %c8_i32 = arith.constant 8 : i32
      %58 = vector.broadcast %c8_i32 : i32 to vector<16x1xi32>
      %59 = arith.cmpi slt, %57, %58 : vector<16x1xi32>
      %cst_35 = arith.constant 0.000000e+00 : f32
      %60 = vector.broadcast %cst_35 : f32 to vector<16x1xf32>
      %61 = arith.select %59, %53, %60 : vector<16x1xi1>, vector<16x1xf32>
      %c0_36 = arith.constant 0 : index
      %c0_37 = arith.constant 0 : index
      %62 = vector.load %arg7[%c0_36, %c0_37] : memref<16x1xf32, #tpu.memory_space<vmem>>, vector<16x1xf32>
      tpu.vector_store %arg7[%c0_36, %c0_37], %61 {strides = array<i32>} : memref<16x1xf32, #tpu.memory_space<vmem>>, vector<16x1xf32>,
    } else {
    }
    return
  }
  func.func @transform_0(%arg0: i32, %arg1: i32) -> i32 {
    %c0_i32 = arith.constant 0 : i32
    %c0_i32_0 = arith.constant 0 : i32
    return %c0_i32 : i32
  }
  func.func @transform_1(%arg0: i32, %arg1: i32) -> (i32, i32) {
    %c0_i32 = arith.constant 0 : i32
    %c0_i32_0 = arith.constant 0 : i32
    return %arg0, %c0_i32 : i32, i32
  }
  func.func @transform_2(%arg0: i32, %arg1: i32) -> (i32, i32) {
    %c0_i32 = arith.constant 0 : i32
    %c0_i32_0 = arith.constant 0 : i32
    return %arg0, %c0_i32 : i32, i32
  }
  func.func @transform_3(%arg0: i32, %arg1: i32) -> (i32, i32) {
    %c0_i32 = arith.constant 0 : i32
    %c0_i32_0 = arith.constant 0 : i32
    return %arg1, %c0_i32 : i32, i32
  }
  func.func @transform_4(%arg0: i32, %arg1: i32) -> (i32, i32) {
    %c0_i32 = arith.constant 0 : i32
    return %arg0, %arg1 : i32, i32
  }
  func.func @transform_5(%arg0: i32, %arg1: i32) -> (i32, i32) {
    %c0_i32 = arith.constant 0 : i32
    %c0_i32_0 = arith.constant 0 : i32
    return %arg0, %c0_i32 : i32, i32
  }
}

</mosaic_0001>

<llo_original>
// kernel: tpu_custom_call.1
$region0: #{tpu_custom_call.1}
  #allocation0 [shape = 'u32[]', space=smem, size = 0x4, offset = 0x4, fixed_abs, tag = 'smem constant byte address 0x4 - core index']
  #allocation1 [shape = 'u32[144,128]{1,0:T(1,128)}', space=vmem, size = 0x12000, scoped, tag = 'internal scratch']
  #allocation2 [shape = 'f32[16,1]{1,0:T(8,128)}', space=vmem, size = 0x2000, scoped, tag = 'scratch operand']
  #allocation3 [shape = 'f32[16,1]{1,0:T(8,128)}', space=vmem, size = 0x2000, scoped, tag = 'scratch operand']
  #allocation4 [shape = 'f32[16,1]{1,0:T(8,128)}', space=vmem, size = 0x2000, scoped, tag = 'scratch operand']
  #allocation5 [shape = 'f32[1]{0:T(128)S(6)}', space=smem, size = 0x200, scoped, tag = 'scoped memory for tpu_custom_call.1']
  %s0 = inlined_call_operand.<no memory space> [shape: f32[1], index: 0, kind: input, shape index: {}]
  %s1 = inlined_call_operand.vmem [shape: s32[16,1], index: 1, kind: input, shape index: {}]
  %s2 = inlined_call_operand.vmem [shape: bf16[16,128], index: 2, kind: input, shape index: {}]
  %s3 = inlined_call_operand.hbm [shape: bf16[128,128], index: 3, kind: input, shape index: {}]
  %s4 = inlined_call_operand.hbm [shape: bf16[16,128], index: 4, kind: output, shape index: {0}]
  %s5 = inlined_call_operand.vmem [shape: f32[16,1], index: 5, kind: output, shape index: {1}]
  %6 = xla_tuple %s4, %s5
  %s7 = sld [smem:[#allocation0]]
  $region46: #{tpu_custom_call.1} parent=0
    _
  %s9 = ssub.s32 1, %s7
  %s10 = scalar_select 0, %s9, %s7
  %11 = sst [smem:[#allocation5]] %s0
  $region1: #{tpu_custom_call.1} parent=0
    #allocation6 [shape = 'u8[32768]{0}', space=vmem, size = 0x8000, scoped, tag = 'input window, operand 3, single buffered']
    #allocation7 [shape = 's32[1]{0}', space=sflag, size = 0x4, scoped, tag = 'scoped memory for tpu_custom_call.1']
    #allocation8 [shape = 's32[1]{0}', space=sflag, size = 0x4, scoped, tag = 'scoped memory for tpu_custom_call.1']
    #allocation9 [shape = 'u8[4096]{0}', space=vmem, size = 0x1000, scoped, tag = 'output window, operand 0, single buffered']
    %12 = vsyncpa [#allocation7], 0
    %13 = vsyncpa [#allocation8], 0
    // Predicated region
    $region2: #{tpu_custom_call.1} parent=1 // pred_check
      _
    $region3: #{tpu_custom_call.1} parent=1 // pred_check_branch
      %15 = sbr.rel (0) target = $region5
    $region4: #{tpu_custom_call.1} parent=1 // pred_region
      _
    $region5: #{tpu_custom_call.1} parent=1 // pred_fallthru
      _
    // Predicated region
    $region6: #{tpu_custom_call.1} parent=1 // pred_check
      _
    $region7: #{tpu_custom_call.1} parent=1 // pred_check_branch
      %17 = sbr.rel (0) target = $region9
    $region8: #{tpu_custom_call.1} parent=1 // pred_region
      _
    $region9: #{tpu_custom_call.1} parent=1 // pred_fallthru
      _
    // Predicated region
    $region10: #{tpu_custom_call.1} parent=1 // pred_check
      _
    $region11: #{tpu_custom_call.1} parent=1 // pred_check_branch
      %19 = sbr.rel (0) target = $region13
    $region12: #{tpu_custom_call.1} parent=1 // pred_region
      _
    $region13: #{tpu_custom_call.1} parent=1 // pred_fallthru
      _
    // Predicated region
    $region14: #{tpu_custom_call.1} parent=1 // pred_check
      _
    $region15: #{tpu_custom_call.1} parent=1 // pred_check_branch
      %21 = sbr.rel (0) target = $region17
    $region16: #{tpu_custom_call.1} parent=1 // pred_region
      %s23 = ssub.s32 1024, 1024
      %24 = vsyncadd [#allocation7], %s23
      %s25 = sshll.u32 [#allocation6], 4
      %s26 = int_to_ptr.vmem [resolvable:$true] %s25
      %31 = dma.hbm_to_vmem [thread:$0]  %s3, 1024, %s26, [#allocation7], 64, 64, 4
    $region17: #{tpu_custom_call.1} parent=1 // pred_fallthru
      _
    // Predicated region
    $region18: #{tpu_custom_call.1} parent=1 // pred_check
      _
    $region19: #{tpu_custom_call.1} parent=1 // pred_check_branch
      %33 = sbr.rel (0) target = $region21
    $region20: #{tpu_custom_call.1} parent=1 // pred_region
      %34 = dma.done [#allocation7], 1024
    $region21: #{tpu_custom_call.1} parent=1 // pred_fallthru
      _
    %p36 = scmp.eq.s32.totalorder 0, 0
    // Predicated region
    $region22: #{tpu_custom_call.1} parent=1 // pred_check
      %p37 = pneg %p36
    $region23: #{tpu_custom_call.1} parent=1 // pred_check_branch
      %39 = sbr.rel (%p37) target = $region25
    $region24: #{tpu_custom_call.1} parent=1 // pred_region
      %vm40 = vcmask 7168
      %41 = vst.msk [vmem:[#allocation2] sm:$0xff] %vm40, -inf
      %42 = vst.msk [vmem:[#allocation2 + $0x8] sm:$0xff] %vm40, -inf
      %43 = vst.msk [vmem:[#allocation3] sm:$0xff] %vm40, 0.0
      %44 = vst.msk [vmem:[#allocation3 + $0x8] sm:$0xff] %vm40, 0.0
      %45 = vst.msk [vmem:[#allocation4] sm:$0xff] %vm40, 0.0
      %46 = vst.msk [vmem:[#allocation4 + $0x8] sm:$0xff] %vm40, 0.0
    $region25: #{tpu_custom_call.1} parent=1 // pred_fallthru
      _
    %s47 = sld [smem:[#allocation5]]
    %v48 = vld [vmem:[%s2] sm:$0xf]
    %v49 = vld [vmem:[%s2 + $0x4] sm:$0xf]
    %v50 = vld [vmem:[#allocation6] sm:$0xf]
    %v51 = vld [vmem:[#allocation6 + $0x4] sm:$0xf]
    %v52 = vld [vmem:[#allocation6 + $0x8] sm:$0xf]
    %v53 = vld [vmem:[#allocation6 + $0xc] sm:$0xf]
    %v54 = vld [vmem:[#allocation6 + $0x10] sm:$0xf]
    %v55 = vld [vmem:[#allocation6 + $0x14] sm:$0xf]
    %v56 = vld [vmem:[#allocation6 + $0x18] sm:$0xf]
    %v57 = vld [vmem:[#allocation6 + $0x1c] sm:$0xf]
    %v58 = vld [vmem:[#allocation6 + $0x20] sm:$0xf]
    %v59 = vld [vmem:[#allocation6 + $0x24] sm:$0xf]
    %v60 = vld [vmem:[#allocation6 + $0x28] sm:$0xf]
    %v61 = vld [vmem:[#allocation6 + $0x2c] sm:$0xf]
    %v62 = vld [vmem:[#allocation6 + $0x30] sm:$0xf]
    %v63 = vld [vmem:[#allocation6 + $0x34] sm:$0xf]
    %v64 = vld [vmem:[#allocation6 + $0x38] sm:$0xf]
    %v65 = vld [vmem:[#allocation6 + $0x3c] sm:$0xf]
    %v68 = vunpack.c.l.b16 %v48
    %v69 = vunpack.c.l.b16 %v49
    %v70 = vpack.c.b16 %v69, %v68
    %v88 = vunpack.c.l.b16 %v50
    %v89 = vunpack.c.l.b16 %v51
    %v90 = vunpack.c.l.b16 %v52
    %v91 = vunpack.c.l.b16 %v53
    %v92 = vunpack.c.l.b16 %v54
    %v93 = vunpack.c.l.b16 %v55
    %v94 = vunpack.c.l.b16 %v56
    %v95 = vunpack.c.l.b16 %v57
    %v96 = vunpack.c.l.b16 %v58
    %v97 = vunpack.c.l.b16 %v59
    %v98 = vunpack.c.l.b16 %v60
    %v99 = vunpack.c.l.b16 %v61
    %v100 = vunpack.c.l.b16 %v62
    %v101 = vunpack.c.l.b16 %v63
    %v102 = vunpack.c.l.b16 %v64
    %v103 = vunpack.c.l.b16 %v65
    %v104 = vpack.c.b16 %v89, %v88
    %v105 = vpack.c.b16 %v91, %v90
    %v106 = vpack.c.b16 %v93, %v92
    %v107 = vpack.c.b16 %v95, %v94
    %v108 = vpack.c.b16 %v97, %v96
    %v109 = vpack.c.b16 %v99, %v98
    %v110 = vpack.c.b16 %v101, %v100
    %v111 = vpack.c.b16 %v103, %v102
    %120 = vmatprep.subr.bf16.mxu0 0
    %121 = vmatpush1.bf16.xpose.msra.mxu0 %v104
    %122 = vmatprep.subr.bf16.mxu0 0
    %123 = vmatpush1.bf16.xpose.msra.mxu0 %v105
    %124 = vmatprep.subr.bf16.mxu0 0
    %125 = vmatpush1.bf16.xpose.msra.mxu0 %v106
    %126 = vmatprep.subr.bf16.mxu0 0
    %127 = vmatpush1.bf16.xpose.msra.mxu0 %v107
    %128 = vmatprep.subr.bf16.mxu0 0
    %129 = vmatpush1.bf16.xpose.msra.mxu0 %v108
    %130 = vmatprep.subr.bf16.mxu0 0
    %131 = vmatpush1.bf16.xpose.msra.mxu0 %v109
    %132 = vmatprep.subr.bf16.mxu0 0
    %133 = vmatpush1.bf16.xpose.msra.mxu0 %v110
    %134 = vmatprep.subr.bf16.mxu0 0
    %135 = vmatpush1.bf16.xpose.msra.mxu0 %v111
    %136 = vmatprep.subr.bf16.mxu0 0
    %137 = vmatpush1.bf16.xpose.msra.mxu0 0
    %138 = vmatprep.subr.bf16.mxu0 0
    %139 = vmatpush1.bf16.xpose.msra.mxu0 0
    %140 = vmatprep.subr.bf16.mxu0 0
    %141 = vmatpush1.bf16.xpose.msra.mxu0 0
    %142 = vmatprep.subr.bf16.mxu0 0
    %143 = vmatpush1.bf16.xpose.msra.mxu0 0
    %144 = vmatprep.subr.bf16.mxu0 0
    %145 = vmatpush1.bf16.xpose.msra.mxu0 0
    %146 = vmatprep.subr.bf16.mxu0 0
    %147 = vmatpush1.bf16.xpose.msra.mxu0 0
    %148 = vmatprep.subr.bf16.mxu0 0
    %149 = vmatpush1.bf16.xpose.msra.mxu0 0
    %150 = vmatprep.subr.bf16.mxu0 0
    %151 = vmatpush1.bf16.xpose.msra.mxu0 0
    %152 = vmatprep.mubr.bf16.mxu0 0
    %153 = vmatmul.mubr.bf16.gmra.mrb[0].mxu0 %v70
    %v154 = vpop.f32.mrb[0].mxu0
    %v155 = vadd.f32 0.0, %v154
    %v156 = vpop.f32.mrb[0].mxu0
    %v157 = vpop.f32.mrb[0].mxu0
    %v158 = vadd.f32 0.0, %v157
    %v159 = vpop.f32.mrb[0].mxu0
    %160 = vdwg.mxu0
    %v161 = vstv %s47
    %v162 = vmul.f32 %v155, %v161
    %v163 = vmul.f32 %v158, %v161
    %v164 = vpack.c.bf16 %v163, %v162
    %v166 = vunpack.c.l.b16 %v164
    %v167 = vunpack.c.h.b16 %v164
    %v168 = vpack.c.b16 %v166, %v166
    %v169 = vpack.c.b16 %v167, %v167
    %172 = vst [vmem:[#allocation9] sm:$0xf] %v168
    %173 = vst [vmem:[#allocation9 + $0x4] sm:$0xf] %v169
    %v174 = vlaneseq
    %v175 = vand.u32 %v174, 127
    %s176 = smul.u32 0, 128
    %v177 = vstv %s176
    %v178 = vadd.s32 %v175, %v177
    %vm179 = vcmp.lt.s32.totalorder %v178, 16
    %v180 = vsel %vm179, %v162, -inf
    %v181 = vsel %vm179, %v163, -inf
    %v182 = vld [vmem:[#allocation2] sm:$0xff]
    %v183 = vld [vmem:[#allocation2 + $0x8] sm:$0xff]
    %184 = vmax.xlane.f32.xlu0 %v180
    %v185 = vpop.xlane.xlu0 %184
    %186 = vmax.xlane.f32.xlu0 %v181
    %v187 = vpop.xlane.xlu0 %186
    %v188 = vmax.f32 %v182, %v185
    %v189 = vmax.f32 %v183, %v187
    %v190 = vsub.f32 %v182, %v188
    %v191 = vsub.f32 %v183, %v189
    %v192 = vmul.f32 %v190, 1.442695
    %v193 = vpow.pop %v192
    %v194 = vmul.f32 %v191, 1.442695
    %v195 = vpow.pop %v194
    %197 = vset.pattern.permute.xlu0 0
    %198 = vperm.xlu0 %197, %v188
    %v199 = vpop.permute.xlu0 %198
    %202 = vset.pattern.permute.xlu0 0
    %203 = vperm.xlu0 %202, %v189
    %v204 = vpop.permute.xlu0 %203
    %v206 = vsub.f32 %v180, %v199
    %v207 = vsub.f32 %v181, %v204
    %v208 = vmul.f32 %v206, 1.442695
    %v209 = vpow.pop %v208
    %v210 = vmul.f32 %v207, 1.442695
    %v211 = vpow.pop %v210
    %v212 = vld [vmem:[#allocation3] sm:$0xff]
    %v213 = vld [vmem:[#allocation3 + $0x8] sm:$0xff]
    %v214 = vmul.f32 %v193, %v212
    %v215 = vmul.f32 %v195, %v213
    %216 = vadd.xlane.f32.xlu0 %v209
    %v217 = vpop.xlane.xlu0 %216
    %218 = vadd.xlane.f32.xlu0 %v211
    %v219 = vpop.xlane.xlu0 %218
    %v220 = vadd.f32 %v214, %v217
    %v221 = vadd.f32 %v215, %v219
    %vm222 = vcmask 7168
    %223 = vst.msk [vmem:[#allocation3] sm:$0xff] %vm222, %v220
    %224 = vst.msk [vmem:[#allocation3 + $0x8] sm:$0xff] %vm222, %v221
    %225 = vst.msk [vmem:[#allocation2] sm:$0xff] %vm222, %v188
    %226 = vst.msk [vmem:[#allocation2 + $0x8] sm:$0xff] %vm222, %v189
    %v227 = vld [vmem:[%s1] sm:$0xff]
    %v228 = vld [vmem:[%s1 + $0x8] sm:$0xff]
    %229 = vset.pattern.permute.xlu0 0
    %230 = vperm.xlu0 %229, %v227
    %v231 = vpop.permute.xlu0 %230
    %232 = vset.pattern.permute.xlu0 0
    %233 = vperm.xlu0 %232, %v228
    %v234 = vpop.permute.xlu0 %233
    %vm235 = vcmp.eq.s32.totalorder %v178, %v231
    %vm236 = vcmp.eq.s32.totalorder %v178, %v234
    %v237 = vld [vmem:[#allocation4] sm:$0xff]
    %v238 = vld [vmem:[#allocation4 + $0x8] sm:$0xff]
    %v239 = vsel %vm235, %v162, 0.0
    %v240 = vsel %vm236, %v163, 0.0
    %241 = vadd.xlane.f32.xlu0 %v239
    %v242 = vpop.xlane.xlu0 %241
    %243 = vadd.xlane.f32.xlu0 %v240
    %v244 = vpop.xlane.xlu0 %243
    %v245 = vadd.f32 %v237, %v242
    %v246 = vadd.f32 %v238, %v244
    %247 = vst.msk [vmem:[#allocation4] sm:$0xff] %vm222, %v245
    %248 = vst.msk [vmem:[#allocation4 + $0x8] sm:$0xff] %vm222, %v246
    // Predicated region
    $region26: #{tpu_custom_call.1} parent=1 // pred_check
      %p249 = pneg %p36
    $region27: #{tpu_custom_call.1} parent=1 // pred_check_branch
      %251 = sbr.rel (%p249) target = $region29
    $region28: #{tpu_custom_call.1} parent=1 // pred_region
      %v252 = vld [vmem:[#allocation2] sm:$0xff]
      %v253 = vld [vmem:[#allocation2 + $0x8] sm:$0xff]
      %v254 = vld [vmem:[#allocation3] sm:$0xff]
      %v255 = vld [vmem:[#allocation3 + $0x8] sm:$0xff]
      %v256 = vlog2.pop %v254
      %v257 = vmul.f32 %v256, 0.6931472
      %v258 = vlog2.pop %v255
      %v259 = vmul.f32 %v258, 0.6931472
      %v260 = vadd.f32 %v252, %v257
      %v261 = vadd.f32 %v253, %v259
      %v262 = vld [vmem:[#allocation4] sm:$0xff]
      %v263 = vld [vmem:[#allocation4 + $0x8] sm:$0xff]
      %v264 = vsub.f32 %v260, %v262
      %v265 = vsub.f32 %v261, %v263
      %v266 = vlaneseq
      %v267 = vshrl.u32 %v266, 7
      %v268 = vadd.s32 %v267, 8
      %s269 = smul.u32 0, 16
      %v270 = vstv %s269
      %v271 = vadd.s32 %v267, %v270
      %v272 = vadd.s32 %v268, %v270
      %vm273 = vcmp.lt.s32.totalorder %v271, 8
      %vm274 = vcmp.lt.s32.totalorder %v272, 8
      %v275 = vsel %vm273, %v264, 0.0
      %v276 = vsel %vm274, %v265, 0.0
      %277 = vst.msk [vmem:[%s5] sm:$0xff] %vm222, %v275
      %278 = vst.msk [vmem:[%s5 + $0x8] sm:$0xff] %vm222, %v276
    $region29: #{tpu_custom_call.1} parent=1 // pred_fallthru
      _
    // Predicated region
    $region30: #{tpu_custom_call.1} parent=1 // pred_check
      _
    $region31: #{tpu_custom_call.1} parent=1 // pred_check_branch
      %280 = sbr.rel (0) target = $region33
    $region32: #{tpu_custom_call.1} parent=1 // pred_region
      %s282 = ssub.s32 128, 128
      %283 = vsyncadd [#allocation8], %s282
      %s284 = sshll.u32 [#allocation9], 4
      %s285 = int_to_ptr.vmem [resolvable:$true] %s284
      %290 = dma.vmem_to_hbm [thread:$0]  %s285, 128, %s4, [#allocation8], 64, 64, 4
    $region33: #{tpu_custom_call.1} parent=1 // pred_fallthru
      _
    // Predicated region
    $region34: #{tpu_custom_call.1} parent=1 // pred_check
      _
    $region35: #{tpu_custom_call.1} parent=1 // pred_check_branch
      %292 = sbr.rel (0) target = $region37
    $region36: #{tpu_custom_call.1} parent=1 // pred_region
      _
    $region37: #{tpu_custom_call.1} parent=1 // pred_fallthru
      _
    // Predicated region
    $region38: #{tpu_custom_call.1} parent=1 // pred_check
      _
    $region39: #{tpu_custom_call.1} parent=1 // pred_check_branch
      %294 = sbr.rel (0) target = $region41
    $region40: #{tpu_custom_call.1} parent=1 // pred_region
      %295 = dma.done [#allocation8], 128
    $region41: #{tpu_custom_call.1} parent=1 // pred_fallthru
      _
    // Predicated region
    $region42: #{tpu_custom_call.1} parent=1 // pred_check
      _
    $region43: #{tpu_custom_call.1} parent=1 // pred_check_branch
      %297 = sbr.rel (0) target = $region45
    $region44: #{tpu_custom_call.1} parent=1 // pred_region
      _
    $region45: #{tpu_custom_call.1} parent=1 // pred_fallthru
      _
    %298 = vsyncpa [#allocation7], 1
    %299 = vsyncpa [#allocation8], 1

</llo_original>
